<compile_context>
chip_gen: v6e
topology: v6e:2x2x1
jax: 0.10.0
libtpu: 0.0.40
codegen_flags: <defaults>
</compile_context>

<pallas_src>
import jax
import jax.numpy as jnp
from jax.experimental import pallas as pl
from jax.experimental.pallas import tpu as pltpu


def _round_up(x, m):
    return ((x + m - 1) // m) * m


def _wnorm_kernel_sub(latent_ref, avg_ref, norms_ref):
    # latent_ref: (tb, 4*D) stored-dtype block (styles 4:8, lane-dense)
    # avg_ref:    (1, 4*D)  latent_avg tiled over the 4 styles
    # norms_ref:  (tb, 1)   per-batch Frobenius norms
    lat = latent_ref[...].astype(jnp.float32)
    diff = lat - avg_ref[...].astype(jnp.float32)          # broadcast over tb rows
    sumsq = jnp.sum(diff * diff, axis=1, keepdims=True)    # lane-axis reduce -> (tb, 1)
    norms_ref[...] = jnp.sqrt(sumsq)


def _wnorm_kernel_plain(latent_ref, norms_ref):
    lat = latent_ref[...].astype(jnp.float32)
    sumsq = jnp.sum(lat * lat, axis=1, keepdims=True)
    norms_ref[...] = jnp.sqrt(sumsq)


def w_norm_loss(latent, latent_avg=None, start_from_latent_avg=True,
                *, block_bytes_cap=4 << 20):
    """latent: [B, N, D]; latent_avg: [D], [1, D] or [4, D] (broadcast over styles)."""
    B, N, D = latent.shape
    itemsize = jnp.dtype(latent.dtype).itemsize

    if start_from_latent_avg:
        assert latent_avg is not None
        S = 4
        width = S * D
        if width % 128 == 0 and N >= 8:
            # Fast path: contiguous (free) reshape, style slice 4:8 expressed purely
            # in the BlockSpec -> no extra HBM pass before the kernel.
            data = latent.reshape(B, N * D)
            col_block = 1                      # block index 1 == columns [4*D, 8*D)
        else:
            # Rare-shape fallback: materialize the slice in the wrapper.
            data = latent[:, 4:8, :].reshape(B, width)
            col_block = 0
        avg2 = jnp.broadcast_to(jnp.asarray(latent_avg), (S, D)).reshape(1, width)
    else:
        width = N * D
        data = latent.reshape(B, width)        # contiguous reshape, free
        col_block = 0
        avg2 = None

    row_bytes = width * itemsize

    # Batch tile: multiple of 8 sublanes, sized by bytes only (~4 MiB blocks reach
    # ~85%+ of HBM roofline; 2x double-buffer stays under v5e's 16 MiB scoped VMEM).
    tb = max(8, (block_bytes_cap // max(1, row_bytes)) // 8 * 8)
    b_ceil = _round_up(B, 8)
    tb = min(tb, b_ceil)
    if B > 8 and tb >= b_ceil:
        # Keep >= 2 "parallel" grid steps so both v7x TensorCores get blocks.
        tb = max(8, _round_up((B + 1) // 2, 8))
    grid = (pl.cdiv(B, tb),)                   # partial tail block is masked by Pallas

    # TODO(synk): if a single row (S*D) is so large that 2*tb*row_bytes exceeds
    # physical VMEM, the reduction should be chunked over the S*D axis instead.
    vmem_limit = int(max(16 << 20,
                         2 * tb * row_bytes + 2 * tb * 4 + row_bytes + (1 << 20)))
    compiler_params = pltpu.CompilerParams(
        dimension_semantics=("parallel",),     # independent blocks (v7x 2xTC sharding)
        vmem_limit_bytes=vmem_limit,
    )

    out_shape = jax.ShapeDtypeStruct((B, 1), jnp.float32)
    out_spec = pl.BlockSpec((tb, 1), lambda g: (g, 0))

    if start_from_latent_avg:
        norms = pl.pallas_call(
            _wnorm_kernel_sub,
            out_shape=out_shape,
            grid_spec=pltpu.PrefetchScalarGridSpec(
                num_scalar_prefetch=0,
                grid=grid,
                in_specs=[
                    pl.BlockSpec((tb, width), lambda g: (g, col_block)),
                    pl.BlockSpec((1, width), lambda g: (0, 0)),
                ],
                out_specs=out_spec,
            ),
            compiler_params=compiler_params,
        )(data, avg2)
    else:
        norms = pl.pallas_call(
            _wnorm_kernel_plain,
            out_shape=out_shape,
            grid_spec=pltpu.PrefetchScalarGridSpec(
                num_scalar_prefetch=0,
                grid=grid,
                in_specs=[pl.BlockSpec((tb, width), lambda g: (g, col_block))],
                out_specs=out_spec,
            ),
            compiler_params=compiler_params,
        )(data)

    # Final reduction over B scalars and /B: trivial XLA glue.
    return jnp.sum(norms[:, 0]) / B


def _w_norm_loss_ref(latent, latent_avg=None, start_from_latent_avg=True):
    if start_from_latent_avg:
        latent = latent[:, 4:8, :] - latent_avg
    norms = jnp.sqrt(jnp.sum(latent.astype(jnp.float32) ** 2, axis=(1, 2)))
    return jnp.sum(norms) / latent.shape[0]


if __name__ == "__main__":
    key = jax.random.PRNGKey(0)
    k1, k2, k3, k4 = jax.random.split(key, 4)

    # Case 1: small W+ style codes, fast BlockSpec-slice path (4*D = 128).
    B, N, D = 2, 8, 32
    latent = jax.random.normal(k1, (B, N, D), dtype=jnp.float32)
    latent_avg = jax.random.normal(k2, (D,), dtype=jnp.float32)

    loss = jax.block_until_ready(w_norm_loss(latent, latent_avg, True))
    ref = _w_norm_loss_ref(latent, latent_avg, True)
    assert jnp.allclose(loss, ref, rtol=1e-5, atol=1e-5), (loss, ref)

    loss2 = jax.block_until_ready(w_norm_loss(latent, None, False))
    ref2 = _w_norm_loss_ref(latent, None, False)
    assert jnp.allclose(loss2, ref2, rtol=1e-5, atol=1e-5), (loss2, ref2)

    # Case 2: B not a multiple of 8 (partial tail block, 2 grid steps) and a D
    # where 4*D % 128 != 0 (exercises the wrapper-slice fallback path).
    B2, N2, D2 = 10, 8, 48
    latent_b = jax.random.normal(k3, (B2, N2, D2), dtype=jnp.float32)
    latent_avg_b = jax.random.normal(k4, (D2,), dtype=jnp.float32)

    loss3 = jax.block_until_ready(w_norm_loss(latent_b, latent_avg_b, True))
    ref3 = _w_norm_loss_ref(latent_b, latent_avg_b, True)
    assert jnp.allclose(loss3, ref3, rtol=1e-5, atol=1e-5), (loss3, ref3)

    loss4 = jax.block_until_ready(w_norm_loss(latent_b, None, False))
    ref4 = _w_norm_loss_ref(latent_b, None, False)
    assert jnp.allclose(loss4, ref4, rtol=1e-5, atol=1e-5), (loss4, ref4)

    print("KERNEL_OK")
</pallas_src>

<mosaic_0001>
module attributes {stable_mosaic.version = 11 : i64} {
  func.func @_wnorm_kernel_sub(%arg0: i32, %arg1: memref<8x128xf32, #tpu.memory_space<vmem>>, %arg2: memref<1x128xf32, #tpu.memory_space<vmem>>, %arg3: memref<8x1xf32, #tpu.memory_space<vmem>>) attributes {dimension_semantics = [#tpu.dimension_semantics<parallel>], iteration_bounds = array<i64: 1>, scalar_prefetch = 0 : i64, scratch_operands = 0 : i64, tpu.core_type = #tpu.core_type<tc>, window_params = [{transform_indices = @transform_0, window_bounds = array<i64: 8, 128>}, {pipeline_mode = #tpu.pipeline_mode<synchronous>, transform_indices = @transform_1, window_bounds = array<i64: 1, 128>}, {transform_indices = @transform_2, window_bounds = array<i64: 8, 1>}]} {
    %c0 = arith.constant 0 : index
    %c0_0 = arith.constant 0 : index
    %0 = vector.load %arg1[%c0, %c0_0] : memref<8x128xf32, #tpu.memory_space<vmem>>, vector<8x128xf32>
    %c0_1 = arith.constant 0 : index
    %c0_2 = arith.constant 0 : index
    %1 = vector.load %arg2[%c0_1, %c0_2] : memref<1x128xf32, #tpu.memory_space<vmem>>, vector<1x128xf32>
    %2 = vector.broadcast %1 : vector<1x128xf32> to vector<8x128xf32>
    %3 = arith.subf %0, %2 : vector<8x128xf32>
    %4 = arith.mulf %3, %3 : vector<8x128xf32>
    %cst = arith.constant dense<0.000000e+00> : vector<8xf32>
    %5 = vector.multi_reduction <add>, %4, %cst [1] : vector<8x128xf32> to vector<8xf32>
    %6 = vector.shape_cast %5 : vector<8xf32> to vector<8x1xf32>
    %7 = math.sqrt %6 : vector<8x1xf32>
    %c0_3 = arith.constant 0 : index
    %c0_4 = arith.constant 0 : index
    %8 = vector.load %arg3[%c0_3, %c0_4] : memref<8x1xf32, #tpu.memory_space<vmem>>, vector<8x1xf32>
    tpu.vector_store %arg3[%c0_3, %c0_4], %7 {strides = array<i32>} : memref<8x1xf32, #tpu.memory_space<vmem>>, vector<8x1xf32>,
    return
  }
  func.func @transform_0(%arg0: i32) -> (i32, i32) {
    %c1_i32 = arith.constant 1 : i32
    %c0_i32 = arith.constant 0 : i32
    return %arg0, %c1_i32 : i32, i32
  }
  func.func @transform_1(%arg0: i32) -> (i32, i32) {
    %c0_i32 = arith.constant 0 : i32
    %c0_i32_0 = arith.constant 0 : i32
    %c0_i32_1 = arith.constant 0 : i32
    return %c0_i32, %c0_i32_0 : i32, i32
  }
  func.func @transform_2(%arg0: i32) -> (i32, i32) {
    %c0_i32 = arith.constant 0 : i32
    %c0_i32_0 = arith.constant 0 : i32
    return %arg0, %c0_i32 : i32, i32
  }
}

</mosaic_0001>

<llo_original>
// kernel: tpu_custom_call.1
$region0: #{tpu_custom_call.1}
  #allocation0 [shape = 'u32[]', space=smem, size = 0x4, offset = 0x4, fixed_abs, tag = 'smem constant byte address 0x4 - core index']
  #allocation1 [shape = 'u32[144,128]{1,0:T(1,128)}', space=vmem, size = 0x12000, scoped, tag = 'internal scratch']
  %s0 = inlined_call_operand.hbm [shape: f32[2,256], index: 0, kind: input, shape index: {}]
  %s1 = inlined_call_operand.vmem [shape: f32[1,128], index: 1, kind: input, shape index: {}]
  %s2 = inlined_call_operand.vmem [shape: f32[2,1], index: 2, kind: output, shape index: {}]
  %s3 = sld [smem:[#allocation0]]
  $region52: #{tpu_custom_call.1} parent=0
    _
  %s5 = ssub.s32 1, %s3
  %s6 = scalar_select 0, %s5, %s3
  $region1: #{tpu_custom_call.1} parent=0
    #allocation2 [shape = 'u8[4096]{0}', space=vmem, size = 0x1000, scoped, tag = 'input window, operand 0, single buffered']
    #allocation3 [shape = 's32[1]{0}', space=sflag, size = 0x4, scoped, tag = 'scoped memory for tpu_custom_call.1']
    #allocation4 [shape = 'u8[4096]{0}', space=vmem, size = 0x1000, scoped, tag = 'output window, operand 0, single buffered']
    %7 = vsyncpa [#allocation3], 0
    // Predicated region
    $region2: #{tpu_custom_call.1} parent=1 // pred_check
      _
    $region3: #{tpu_custom_call.1} parent=1 // pred_check_branch
      %9 = sbr.rel (0) target = $region5
    $region4: #{tpu_custom_call.1} parent=1 // pred_region
      %s11 = ssub.s32 128, 32
      %12 = vsyncadd [#allocation3], %s11
      %s13 = scalar_lea.hbm %s0, 32
      %s14 = sshll.u32 [#allocation2], 4
      %s15 = int_to_ptr.vmem [resolvable:$true] %s14
      %20 = dma.hbm_to_vmem [thread:$0]  %s13, 32, %s15, [#allocation3], 64, 32, 2
    $region5: #{tpu_custom_call.1} parent=1 // pred_fallthru
      _
    // Predicated region
    $region6: #{tpu_custom_call.1} parent=1 // pred_check
      _
    $region7: #{tpu_custom_call.1} parent=1 // pred_check_branch
      %22 = sbr.rel (0) target = $region9
    $region8: #{tpu_custom_call.1} parent=1 // pred_region
      _
    $region9: #{tpu_custom_call.1} parent=1 // pred_fallthru
      _
    // Predicated region
    $region10: #{tpu_custom_call.1} parent=1 // pred_check
      _
    $region11: #{tpu_custom_call.1} parent=1 // pred_check_branch
      %24 = sbr.rel (0) target = $region13
    $region12: #{tpu_custom_call.1} parent=1 // pred_region
      %25 = dma.done [#allocation3], 128
    $region13: #{tpu_custom_call.1} parent=1 // pred_fallthru
      _
    %v26 = vld [vmem:[#allocation2] sm:$0xff]
    %v27 = vld [vmem:[%s1] sm:$0x1]
    %v29 = vlaneseq
    %v30 = vshrl.u32 %v29, 7
    %v31 = vsub.s32 0, %v30
    %v32 = vrot.slane %v27, %v31
    %v34 = vsub.f32 %v26, %v32
    %v35 = vmul.f32 %v34, %v34
    %36 = vadd.xlane.f32.xlu0 %v35
    %v37 = vpop.xlane.xlu0 %36
    %v38 = vrsqrt.pop %v37
    %v39 = vmul.f32 %v37, %v38
    %vm40 = vcmp.eq.f32.partialorder %v37, inf
    %v41 = vsel %vm40, %v37, %v39
    %vm42 = vcmp.eq.f32.partialorder %v37, 0.0
    %v43 = vand.u32 %v37, 2147483648
    %v44 = vsel %vm42, %v43, %v41
    %vm45 = vcmask 7168
    %46 = vst.msk [vmem:[#allocation4] sm:$0xff] %vm45, %v44
    // Predicated region
    $region14: #{tpu_custom_call.1} parent=1 // pred_check
      _
    $region15: #{tpu_custom_call.1} parent=1 // pred_check_branch
      %48 = sbr.rel (0) target = $region17
    $region16: #{tpu_custom_call.1} parent=1 // pred_region
      // Predicated region
      $region18: #{tpu_custom_call.1} parent=16 // pred_check
        _
      $region19: #{tpu_custom_call.1} parent=16 // pred_check_branch
        %50 = sbr.rel (0) target = $region21
      $region20: #{tpu_custom_call.1} parent=16 // pred_region
        // Predicated region
        $region22: #{tpu_custom_call.1} parent=20 // pred_check
          _
        $region23: #{tpu_custom_call.1} parent=20 // pred_check_branch
          %52 = sbr.rel target = $region25
        $region24: #{tpu_custom_call.1} parent=20 // pred_region
          // Predicated region
          $region37: #{tpu_custom_call.1} parent=24 // pred_check
            _
          $region38: #{tpu_custom_call.1} parent=24 // pred_check_branch
            %68 = sbr.rel (0) target = $region40
          $region39: #{tpu_custom_call.1} parent=24 // pred_region
            %s70 = ssub.s32 4, 1
            loop: start=0, step=1, limit=1
            $region41: #{tpu_custom_call.1} parent=39 // loop_pre_header
              _
            $region42: #{tpu_custom_call.1} parent=39 // loop_header
              %s72 = sphi 0, %s76
              %p73 = scmp.ge.s32.totalorder %s72, 1
              %s77 = sphi [#allocation4], [#allocation4]
              %s78 = sphi %s2, %s2
            $region43: #{tpu_custom_call.1} parent=39 // loop_header_branch
              %75 = sbr.rel (%p73) target = $region47
            $region44: #{tpu_custom_call.1} parent=39 // loop_body
              %v79 = vld [vmem:[%s77] sm:%s70]
              %80 = vst [vmem:[%s78] sm:%s70] %v79
            $region45: #{tpu_custom_call.1} parent=39 // loop_footer
              %s76 = sadd.s32 1, %s72
            $region46: #{tpu_custom_call.1} parent=39 // loop_footer_branch
              %71 = sbr.rel target = $region42
            $region47: #{tpu_custom_call.1} parent=39 // loop_exit
              _
          $region40: #{tpu_custom_call.1} parent=24 // pred_fallthru
            _
        $region25: #{tpu_custom_call.1} parent=20 // pred_fallthru
          _
        // Predicated region
        $region26: #{tpu_custom_call.1} parent=20 // pred_check
          _
        $region27: #{tpu_custom_call.1} parent=20 // pred_check_branch
          %54 = sbr.rel (0) target = $region29
        $region28: #{tpu_custom_call.1} parent=20 // pred_region
          %s56 = ssub.s32 4, 1
          loop: start=0, step=1, limit=1
          $region30: #{tpu_custom_call.1} parent=28 // loop_pre_header
            _
          $region31: #{tpu_custom_call.1} parent=28 // loop_header
            %s58 = sphi 0, %s62
            %p59 = scmp.ge.s32.totalorder %s58, 1
            %s63 = sphi [#allocation4], [#allocation4]
            %s64 = sphi %s2, %s2
          $region32: #{tpu_custom_call.1} parent=28 // loop_header_branch
            %61 = sbr.rel (%p59) target = $region36
          $region33: #{tpu_custom_call.1} parent=28 // loop_body
            %v65 = vld [vmem:[%s63] sm:%s56]
            %66 = vst [vmem:[%s64] sm:%s56] %v65
          $region34: #{tpu_custom_call.1} parent=28 // loop_footer
            %s62 = sadd.s32 1, %s58
          $region35: #{tpu_custom_call.1} parent=28 // loop_footer_branch
            %57 = sbr.rel target = $region31
          $region36: #{tpu_custom_call.1} parent=28 // loop_exit
            _
        $region29: #{tpu_custom_call.1} parent=20 // pred_fallthru
          _
      $region21: #{tpu_custom_call.1} parent=16 // pred_fallthru
        _
      %81 = vnop
    $region17: #{tpu_custom_call.1} parent=1 // pred_fallthru
      _
    // Predicated region
    $region48: #{tpu_custom_call.1} parent=1 // pred_check
      _
    $region49: #{tpu_custom_call.1} parent=1 // pred_check_branch
      %83 = sbr.rel (0) target = $region51
    $region50: #{tpu_custom_call.1} parent=1 // pred_region
      _
    $region51: #{tpu_custom_call.1} parent=1 // pred_fallthru
      _
    %84 = vsyncpa [#allocation3], 1

</llo_original>
